<compile_context>
chip_gen: v7x
topology: tpu7x:2x2x1
jax: 0.10.0
libtpu: 0.0.40
codegen_flags: <defaults>
</compile_context>

<pallas_src>
import functools
import math

import jax
import jax.numpy as jnp
from jax import lax
from jax.experimental import pallas as pl
from jax.experimental.pallas import tpu as pltpu

_LANES = 128
_SUBLANES = 8


def _precision_kernel(pred_ref, true_ref, tp_ref, sp_ref, tp_acc, sp_acc, *,
                      logit_thr, block_rows, k_steps, total_elems, needs_mask):
    p = pl.program_id(0)   # parallel split (megacore on v7x)
    k = pl.program_id(1)   # reduction steps within the split

    @pl.when(k == 0)
    def _():
        tp_acc[...] = jnp.zeros_like(tp_acc)
        sp_acc[...] = jnp.zeros_like(sp_acc)

    logits = pred_ref[...].astype(jnp.float32)
    labels = true_ref[...].astype(jnp.float32)

    # sigmoid(x) > thr  <=>  x > logit(thr): plain VPU compare, no EUP work.
    pos = logits > logit_thr

    if needs_mask:
        # Mask elements beyond the real length L (covers 1024-pad, the ragged
        # last block, and fully out-of-range duplicate blocks whose index was
        # clamped in the index_map).
        b = p * k_steps + k                                   # unclamped block id
        row = lax.broadcasted_iota(jnp.int32, logits.shape, 0) + b * block_rows
        lane = lax.broadcasted_iota(jnp.int32, logits.shape, 1)
        pos = jnp.logical_and(pos, row * _LANES + lane < total_elems)

    pf = pos.astype(jnp.float32)
    pt = jnp.where(pos, labels, 0.0)

    # Fold (block_rows, 128) -> (8, 128): leading-axis sum = pure vreg-wise
    # adds (no cross-lane XLU work inside the hot loop).
    tp_acc[...] += jnp.sum(pt.reshape(-1, _SUBLANES, _LANES), axis=0)
    sp_acc[...] += jnp.sum(pf.reshape(-1, _SUBLANES, _LANES), axis=0)

    @pl.when(k == pl.num_programs(1) - 1)
    def _():
        tp_ref[...] = tp_acc[...]
        sp_ref[...] = sp_acc[...]


def precision_pallas(y_pred, y_true, threshold=0.5, epsilon=1e-7,
                     num_classes=1):
    """Binary-segmentation precision metric (num_classes == 1 path)."""
    assert num_classes == 1, "only the binary (num_classes=1) path is implemented"
    # TODO(synk): multi-class path (softmax + one_hot over the class axis) is
    # not implemented.
    N, C, H, W = y_pred.shape
    assert C == 1
    L = N * C * H * W

    # sigmoid(x) > t  <=>  x > log(t / (1 - t)); handle degenerate thresholds.
    if threshold <= 0.0:
        logit_thr = -math.inf
    elif threshold >= 1.0:
        logit_thr = math.inf
    else:
        logit_thr = math.log(threshold / (1.0 - threshold))

    # Flatten (free, contiguous) and pad only if needed so the data can be
    # viewed as (rows, 128) with rows a multiple of 8.  Pad values never
    # matter: the kernel masks on the true length L.
    tile = _SUBLANES * _LANES
    L_pad = ((L + tile - 1) // tile) * tile
    flat_p = y_pred.reshape(-1)
    flat_t = y_true.reshape(-1)
    if L_pad != L:
        flat_p = jnp.pad(flat_p, (0, L_pad - L))
        flat_t = jnp.pad(flat_t, (0, L_pad - L))
    rows = L_pad // _LANES                      # multiple of 8

    pred2d = flat_p.reshape(rows, _LANES)
    true2d = flat_t.reshape(rows, _LANES)

    # Tiling: 2048 rows x 128 lanes = 1 MiB per f32 input per pipeline buffer.
    P = 2                                       # parallel splits (2 TCs on v7x)
    block_rows = min(2048, rows)                # rows is a multiple of 8
    n_blocks = (rows + block_rows - 1) // block_rows
    k_steps = (n_blocks + P - 1) // P
    covered = P * k_steps * block_rows * _LANES
    needs_mask = covered != L

    def in_map(p, k):
        # Clamp fully-out-of-range duplicate blocks; their contribution is
        # zeroed by the in-kernel mask.
        return (jnp.minimum(p * k_steps + k, n_blocks - 1), 0)

    kernel = functools.partial(
        _precision_kernel,
        logit_thr=logit_thr,
        block_rows=block_rows,
        k_steps=k_steps,
        total_elems=L,
        needs_mask=needs_mask,
    )

    tp_part, sp_part = pl.pallas_call(
        kernel,
        out_shape=(
            jax.ShapeDtypeStruct((P * _SUBLANES, _LANES), jnp.float32),
            jax.ShapeDtypeStruct((P * _SUBLANES, _LANES), jnp.float32),
        ),
        grid_spec=pltpu.PrefetchScalarGridSpec(
            num_scalar_prefetch=0,
            grid=(P, k_steps),
            in_specs=[
                pl.BlockSpec((block_rows, _LANES), in_map),
                pl.BlockSpec((block_rows, _LANES), in_map),
            ],
            out_specs=[
                pl.BlockSpec((_SUBLANES, _LANES), lambda p, k: (p, 0)),
                pl.BlockSpec((_SUBLANES, _LANES), lambda p, k: (p, 0)),
            ],
            scratch_shapes=[
                pltpu.VMEM((_SUBLANES, _LANES), jnp.float32),
                pltpu.VMEM((_SUBLANES, _LANES), jnp.float32),
            ],
        ),
        compiler_params=pltpu.CompilerParams(
            dimension_semantics=("parallel", "arbitrary")),
    )(pred2d, true2d)

    # Final tiny reductions + precision formula (scalar work) in plain JAX.
    tp = jnp.sum(tp_part)
    sum_p = jnp.sum(sp_part)
    fp = sum_p - tp                    # == sum(p * (1 - t)) for 0/1 labels
    precision = tp / (tp + fp + epsilon)
    return precision / num_classes


def precision_ref(y_pred, y_true, threshold=0.5, epsilon=1e-7):
    # Pure-JAX reference mirroring the PyTorch module, for sanity checking.
    p = (jax.nn.sigmoid(y_pred.astype(jnp.float32)) > threshold).astype(jnp.float32)
    t = y_true.astype(jnp.float32)
    axis = (0, 2, 3)
    tp = jnp.sum(p * t, axis=axis)
    fp = jnp.sum(p * (1.0 - t), axis=axis)
    return jnp.sum(tp / (tp + fp + epsilon)) / 1


if __name__ == "__main__":
    key = jax.random.PRNGKey(0)

    # Small shape consistent with the module (binary segmentation logits).
    k1, k2 = jax.random.split(key)
    N, C, H, W = 2, 1, 16, 16
    y_pred = jax.random.normal(k1, (N, C, H, W), dtype=jnp.float32)
    y_true = jax.random.bernoulli(k2, 0.5, (N, C, H, W)).astype(jnp.float32)

    out = precision_pallas(y_pred, y_true)
    out = jax.block_until_ready(out)
    ref = precision_ref(y_pred, y_true)
    assert jnp.allclose(out, ref, atol=1e-5), (out, ref)

    # Second check: exercises multi-block accumulation, the ragged last block
    # and the clamped duplicate block of the parallel split.
    k3, k4 = jax.random.split(jax.random.PRNGKey(1))
    N2, C2, H2, W2 = 2, 1, 512, 640
    y_pred2 = jax.random.normal(k3, (N2, C2, H2, W2), dtype=jnp.float32)
    y_true2 = jax.random.bernoulli(k4, 0.3, (N2, C2, H2, W2)).astype(jnp.float32)

    out2 = jax.block_until_ready(precision_pallas(y_pred2, y_true2))
    ref2 = precision_ref(y_pred2, y_true2)
    assert jnp.allclose(out2, ref2, atol=1e-5), (out2, ref2)

    print("KERNEL_OK")
</pallas_src>

<mosaic_0001>
module attributes {stable_mosaic.version = 11 : i64} {
  func.func @_precision_kernel(%arg0: i32, %arg1: i32, %arg2: memref<8x128xf32, #tpu.memory_space<vmem>>, %arg3: memref<8x128xf32, #tpu.memory_space<vmem>>, %arg4: memref<8x128xf32, #tpu.memory_space<vmem>>, %arg5: memref<8x128xf32, #tpu.memory_space<vmem>>, %arg6: memref<8x128xf32, #tpu.memory_space<vmem>>, %arg7: memref<8x128xf32, #tpu.memory_space<vmem>>) attributes {dimension_semantics = [#tpu.dimension_semantics<parallel>, #tpu.dimension_semantics<arbitrary>], iteration_bounds = array<i64: 2, 1>, scalar_prefetch = 0 : i64, scratch_operands = 2 : i64, tpu.core_type = #tpu.core_type<tc>, window_params = [{transform_indices = @transform_0, window_bounds = array<i64: 8, 128>}, {transform_indices = @transform_1, window_bounds = array<i64: 8, 128>}, {transform_indices = @transform_2, window_bounds = array<i64: 8, 128>}, {transform_indices = @transform_3, window_bounds = array<i64: 8, 128>}]} {
    %c0_i32 = arith.constant 0 : i32
    %0 = arith.cmpi eq, %arg1, %c0_i32 : i32
    %1 = arith.extui %0 : i1 to i32
    %c0_i32_0 = arith.constant 0 : i32
    %2 = arith.cmpi ne, %1, %c0_i32_0 : i32
    scf.if %2 {
      %cst_17 = arith.constant 0.000000e+00 : f32
      %37 = vector.broadcast %cst_17 : f32 to vector<8x128xf32>
      %c0_18 = arith.constant 0 : index
      %c0_19 = arith.constant 0 : index
      %38 = vector.load %arg6[%c0_18, %c0_19] : memref<8x128xf32, #tpu.memory_space<vmem>>, vector<8x128xf32>
      tpu.vector_store %arg6[%c0_18, %c0_19], %37 {strides = array<i32>} : memref<8x128xf32, #tpu.memory_space<vmem>>, vector<8x128xf32>,
      %cst_20 = arith.constant 0.000000e+00 : f32
      %39 = vector.broadcast %cst_20 : f32 to vector<8x128xf32>
      %c0_21 = arith.constant 0 : index
      %c0_22 = arith.constant 0 : index
      %40 = vector.load %arg7[%c0_21, %c0_22] : memref<8x128xf32, #tpu.memory_space<vmem>>, vector<8x128xf32>
      tpu.vector_store %arg7[%c0_21, %c0_22], %39 {strides = array<i32>} : memref<8x128xf32, #tpu.memory_space<vmem>>, vector<8x128xf32>,
    } else {
    }
    %c0 = arith.constant 0 : index
    %c0_1 = arith.constant 0 : index
    %3 = vector.load %arg2[%c0, %c0_1] : memref<8x128xf32, #tpu.memory_space<vmem>>, vector<8x128xf32>
    %c0_2 = arith.constant 0 : index
    %c0_3 = arith.constant 0 : index
    %4 = vector.load %arg3[%c0_2, %c0_3] : memref<8x128xf32, #tpu.memory_space<vmem>>, vector<8x128xf32>
    %cst = arith.constant 0.000000e+00 : f32
    %5 = vector.broadcast %cst : f32 to vector<8x128xf32>
    %6 = arith.cmpf ogt, %3, %5 : vector<8x128xf32>
    %c1_i32 = arith.constant 1 : i32
    %7 = arith.muli %arg0, %c1_i32 : i32
    %8 = arith.addi %7, %arg1 : i32
    %9 = tpu.iota {dimensions = array<i32: 0>} : vector<8x128xi32>
    %c8_i32 = arith.constant 8 : i32
    %10 = arith.muli %8, %c8_i32 : i32
    %11 = vector.broadcast %10 : i32 to vector<8x128xi32>
    %12 = arith.addi %9, %11 : vector<8x128xi32>
    %13 = tpu.iota {dimensions = array<i32: 1>} : vector<8x128xi32>
    %c128_i32 = arith.constant 128 : i32
    %14 = vector.broadcast %c128_i32 : i32 to vector<8x128xi32>
    %15 = arith.muli %12, %14 : vector<8x128xi32>
    %16 = arith.addi %15, %13 : vector<8x128xi32>
    %c512_i32 = arith.constant 512 : i32
    %17 = vector.broadcast %c512_i32 : i32 to vector<8x128xi32>
    %18 = arith.cmpi slt, %16, %17 : vector<8x128xi32>
    %19 = arith.andi %6, %18 : vector<8x128xi1>
    %20 = arith.extui %19 : vector<8x128xi1> to vector<8x128xi32>
    %21 = arith.sitofp %20 : vector<8x128xi32> to vector<8x128xf32>
    %cst_4 = arith.constant 0.000000e+00 : f32
    %22 = vector.broadcast %cst_4 : f32 to vector<8x128xf32>
    %23 = arith.select %19, %4, %22 : vector<8x128xi1>, vector<8x128xf32>
    %c0_5 = arith.constant 0 : index
    %c0_6 = arith.constant 0 : index
    %24 = vector.load %arg6[%c0_5, %c0_6] : memref<8x128xf32, #tpu.memory_space<vmem>>, vector<8x128xf32>
    %25 = vector.shape_cast %23 : vector<8x128xf32> to vector<1x8x128xf32>
    %cst_7 = arith.constant dense<0.000000e+00> : vector<8x128xf32>
    %26 = vector.multi_reduction <add>, %25, %cst_7 [0] : vector<1x8x128xf32> to vector<8x128xf32>
    %27 = arith.addf %24, %26 : vector<8x128xf32>
    %c0_8 = arith.constant 0 : index
    %c0_9 = arith.constant 0 : index
    %28 = vector.load %arg6[%c0_8, %c0_9] : memref<8x128xf32, #tpu.memory_space<vmem>>, vector<8x128xf32>
    tpu.vector_store %arg6[%c0_8, %c0_9], %27 {strides = array<i32>} : memref<8x128xf32, #tpu.memory_space<vmem>>, vector<8x128xf32>,
    %c0_10 = arith.constant 0 : index
    %c0_11 = arith.constant 0 : index
    %29 = vector.load %arg7[%c0_10, %c0_11] : memref<8x128xf32, #tpu.memory_space<vmem>>, vector<8x128xf32>
    %30 = vector.shape_cast %21 : vector<8x128xf32> to vector<1x8x128xf32>
    %cst_12 = arith.constant dense<0.000000e+00> : vector<8x128xf32>
    %31 = vector.multi_reduction <add>, %30, %cst_12 [0] : vector<1x8x128xf32> to vector<8x128xf32>
    %32 = arith.addf %29, %31 : vector<8x128xf32>
    %c0_13 = arith.constant 0 : index
    %c0_14 = arith.constant 0 : index
    %33 = vector.load %arg7[%c0_13, %c0_14] : memref<8x128xf32, #tpu.memory_space<vmem>>, vector<8x128xf32>
    tpu.vector_store %arg7[%c0_13, %c0_14], %32 {strides = array<i32>} : memref<8x128xf32, #tpu.memory_space<vmem>>, vector<8x128xf32>,
    %c0_i32_15 = arith.constant 0 : i32
    %34 = arith.cmpi eq, %arg1, %c0_i32_15 : i32
    %35 = arith.extui %34 : i1 to i32
    %c0_i32_16 = arith.constant 0 : i32
    %36 = arith.cmpi ne, %35, %c0_i32_16 : i32
    scf.if %36 {
      %c0_17 = arith.constant 0 : index
      %c0_18 = arith.constant 0 : index
      %37 = vector.load %arg6[%c0_17, %c0_18] : memref<8x128xf32, #tpu.memory_space<vmem>>, vector<8x128xf32>
      %c0_19 = arith.constant 0 : index
      %c0_20 = arith.constant 0 : index
      %38 = vector.load %arg4[%c0_19, %c0_20] : memref<8x128xf32, #tpu.memory_space<vmem>>, vector<8x128xf32>
      tpu.vector_store %arg4[%c0_19, %c0_20], %37 {strides = array<i32>} : memref<8x128xf32, #tpu.memory_space<vmem>>, vector<8x128xf32>,
      %c0_21 = arith.constant 0 : index
      %c0_22 = arith.constant 0 : index
      %39 = vector.load %arg7[%c0_21, %c0_22] : memref<8x128xf32, #tpu.memory_space<vmem>>, vector<8x128xf32>
      %c0_23 = arith.constant 0 : index
      %c0_24 = arith.constant 0 : index
      %40 = vector.load %arg5[%c0_23, %c0_24] : memref<8x128xf32, #tpu.memory_space<vmem>>, vector<8x128xf32>
      tpu.vector_store %arg5[%c0_23, %c0_24], %39 {strides = array<i32>} : memref<8x128xf32, #tpu.memory_space<vmem>>, vector<8x128xf32>,
    } else {
    }
    return
  }
  func.func @transform_0(%arg0: i32, %arg1: i32) -> (i32, i32) {
    %c1_i32 = arith.constant 1 : i32
    %0 = arith.muli %arg0, %c1_i32 : i32
    %1 = arith.addi %0, %arg1 : i32
    %c0_i32 = arith.constant 0 : i32
    %2 = arith.minsi %1, %c0_i32 : i32
    %c0_i32_0 = arith.constant 0 : i32
    %c0_i32_1 = arith.constant 0 : i32
    return %2, %c0_i32_0 : i32, i32
  }
  func.func @transform_1(%arg0: i32, %arg1: i32) -> (i32, i32) {
    %c1_i32 = arith.constant 1 : i32
    %0 = arith.muli %arg0, %c1_i32 : i32
    %1 = arith.addi %0, %arg1 : i32
    %c0_i32 = arith.constant 0 : i32
    %2 = arith.minsi %1, %c0_i32 : i32
    %c0_i32_0 = arith.constant 0 : i32
    %c0_i32_1 = arith.constant 0 : i32
    return %2, %c0_i32_0 : i32, i32
  }
  func.func @transform_2(%arg0: i32, %arg1: i32) -> (i32, i32) {
    %c0_i32 = arith.constant 0 : i32
    %c0_i32_0 = arith.constant 0 : i32
    return %arg0, %c0_i32 : i32, i32
  }
  func.func @transform_3(%arg0: i32, %arg1: i32) -> (i32, i32) {
    %c0_i32 = arith.constant 0 : i32
    %c0_i32_0 = arith.constant 0 : i32
    return %arg0, %c0_i32 : i32, i32
  }
}

</mosaic_0001>

<llo_original>
// kernel: tpu_custom_call.1
$region0: #{tpu_custom_call.1}
  #allocation0 [shape = 'u32[]', space=smem, size = 0x4, offset = 0x4, fixed_abs, tag = 'smem constant byte address 0x4 - core index']
  #allocation1 [shape = 'u32[144,128]{1,0:T(1,128)}', space=vmem, size = 0x12000, scoped, tag = 'internal scratch']
  #allocation2 [shape = 'f32[8,128]{1,0:T(8,128)}', space=vmem, size = 0x1000, scoped, tag = 'scratch operand']
  #allocation3 [shape = 'f32[8,128]{1,0:T(8,128)}', space=vmem, size = 0x1000, scoped, tag = 'scratch operand']
  %s0 = inlined_call_operand.hbm [shape: f32[8,128], index: 0, kind: input, shape index: {}]
  %s1 = inlined_call_operand.hbm [shape: f32[8,128], index: 1, kind: input, shape index: {}]
  %s2 = inlined_call_operand.hbm [shape: f32[16,128], index: 2, kind: output, shape index: {0}]
  %s3 = inlined_call_operand.hbm [shape: f32[16,128], index: 3, kind: output, shape index: {1}]
  %4 = xla_tuple %s2, %s3
  %s5 = sld [smem:[#allocation0]]
  $region65: #{tpu_custom_call.1} parent=0
    _
  %s7 = ssub.s32 1, %s5
  %s8 = scalar_select 0, %s7, %s5
  $region1: #{tpu_custom_call.1} parent=0
    #allocation4 [shape = 'u8[8192]{0}', space=vmem, size = 0x2000, scoped, tag = 'input window, operand 0']
    #allocation5 [shape = 's32[2]{0}', space=sflag, size = 0x8, scoped, tag = 'scoped memory for tpu_custom_call.1']
    #allocation6 [shape = 's32[2]{0}', space=sflag, size = 0x8, scoped, tag = 'scoped memory for tpu_custom_call.1']
    #allocation7 [shape = 'u8[8192]{0}', space=vmem, size = 0x2000, scoped, tag = 'input window, operand 1']
    #allocation8 [shape = 's32[2]{0}', space=sflag, size = 0x8, scoped, tag = 'scoped memory for tpu_custom_call.1']
    #allocation9 [shape = 'u8[8192]{0}', space=vmem, size = 0x2000, scoped, tag = 'output window, operand 0']
    #allocation10 [shape = 'u8[8192]{0}', space=vmem, size = 0x2000, scoped, tag = 'output window, operand 1']
    #allocation11 [shape = 's32[2]{0}', space=sflag, size = 0x8, scoped, tag = 'scoped memory for tpu_custom_call.1']
    %9 = vsyncpa [#allocation5], 0
    %s10 = scalar_lea.sflag [#allocation5], 1
    %11 = vsyncpa %s10, 0
    %12 = vsyncpa [#allocation8], 0
    %s13 = scalar_lea.sflag [#allocation8], 1
    %14 = vsyncpa %s13, 0
    %15 = vsyncpa [#allocation6], 0
    %s16 = scalar_lea.sflag [#allocation6], 1
    %17 = vsyncpa %s16, 0
    %18 = vsyncpa [#allocation11], 0
    %s19 = scalar_lea.sflag [#allocation11], 1
    %20 = vsyncpa %s19, 0
    loop: start=0, step=1, limit=4
    $region2: #{tpu_custom_call.1} parent=1 // loop_pre_header
      _
    $region3: #{tpu_custom_call.1} parent=1 // loop_header
      %s22 = sphi 0, %s26
      %p23 = scmp.ge.s32.totalorder %s22, 4
      %s29 = sphi 0, %s41
      %s30 = sphi 0, %s37
      %s31 = sphi 0, %s29
      %s32 = sphi 0, %s30
      %s33 = sphi 0, %s31
      %s34 = sphi 0, %s32
      %s50 = sphi 0, %s52
      %s53 = sphi 0, %s50
      %s54 = sphi 0, %s53
      %s70 = sphi 0, %s54
      %s82 = sphi 0, %s84
      %s85 = sphi 0, %s82
      %s86 = sphi 0, %s85
      %s102 = sphi 0, %s86
      %s108 = sphi 0, %s110
      %s111 = sphi 0, %s108
      %s112 = sphi 0, %s111
      %s128 = sphi 0, %s112
      %s134 = sphi 0, %s136
      %s137 = sphi 0, %s134
      %s138 = sphi 0, %s137
      %s154 = sphi 0, %s138
    $region4: #{tpu_custom_call.1} parent=1 // loop_header_branch
      %25 = sbr.rel (%p23) target = $region8
    $region5: #{tpu_custom_call.1} parent=1 // loop_body
      %s27 = ssub.s32 %s22, 1
      %s28 = ssub.s32 %s22, 2
      %s35 = sadd.s32 1, %s30
      %p36 = scmp.ge.s32.totalorder %s35, 1
      %s37 = scalar_select %p36, 0, %s35
      %s38 = sadd.s32 1, %s29
      %s39 = scalar_select %p36, %s38, %s29
      %p40 = scmp.ge.s32.totalorder %s39, 2
      %s41 = scalar_select %p40, 0, %s39
      %s42 = sadd.s32 %s29, %s30
      %p43 = scmp.lt.s32.totalorder %s42, 0
      %s44 = scalar_select %p43, %s42, 0
      %s45 = sadd.s32 %s41, %s37
      %p46 = scmp.lt.s32.totalorder %s45, 0
      %s47 = scalar_select %p46, %s45, 0
      %s48 = ssub.s32 %s44, %s47
      %p49 = scmp.eq.s32.totalorder %s48, 0
      %s51 = sadd.s32 %s50, 1
      %s52 = scalar_select %p49, %s50, %s51
      %p55 = pneg %p49
      %p56 = scmp.eq.s32.totalorder %s22, 1
      %p57 = por %p55, %p56
      %p58 = scmp.ne.s32.totalorder %s50, %s53
      %p59 = scmp.eq.s32.totalorder %s22, 0
      %p60 = por %p58, %p59
      %p61 = scmp.ne.s32.totalorder %s50, %s53
      %p62 = scmp.eq.s32.totalorder %s27, 1
      %p63 = por %p61, %p62
      %p64 = scmp.ne.s32.totalorder %s53, %s54
      %p65 = scmp.eq.s32.totalorder %s27, 0
      %p66 = por %p64, %p65
      %p67 = scmp.ne.s32.totalorder %s53, %s54
      %p68 = scmp.eq.s32.totalorder %s28, 1
      %p69 = por %p67, %p68
      %p71 = scmp.ne.s32.totalorder %s54, %s70
      %p72 = scmp.eq.s32.totalorder %s28, 0
      %p73 = por %p71, %p72
      %s74 = sadd.s32 %s29, %s30
      %p75 = scmp.lt.s32.totalorder %s74, 0
      %s76 = scalar_select %p75, %s74, 0
      %s77 = sadd.s32 %s41, %s37
      %p78 = scmp.lt.s32.totalorder %s77, 0
      %s79 = scalar_select %p78, %s77, 0
      %s80 = ssub.s32 %s76, %s79
      %p81 = scmp.eq.s32.totalorder %s80, 0
      %s83 = sadd.s32 %s82, 1
      %s84 = scalar_select %p81, %s82, %s83
      %p87 = pneg %p81
      %p88 = scmp.eq.s32.totalorder %s22, 1
      %p89 = por %p87, %p88
      %p90 = scmp.ne.s32.totalorder %s82, %s85
      %p91 = scmp.eq.s32.totalorder %s22, 0
      %p92 = por %p90, %p91
      %p93 = scmp.ne.s32.totalorder %s82, %s85
      %p94 = scmp.eq.s32.totalorder %s27, 1
      %p95 = por %p93, %p94
      %p96 = scmp.ne.s32.totalorder %s85, %s86
      %p97 = scmp.eq.s32.totalorder %s27, 0
      %p98 = por %p96, %p97
      %p99 = scmp.ne.s32.totalorder %s85, %s86
      %p100 = scmp.eq.s32.totalorder %s28, 1
      %p101 = por %p99, %p100
      %p103 = scmp.ne.s32.totalorder %s86, %s102
      %p104 = scmp.eq.s32.totalorder %s28, 0
      %p105 = por %p103, %p104
      %s106 = ssub.s32 %s29, %s41
      %p107 = scmp.eq.s32.totalorder %s106, 0
      %s109 = sadd.s32 %s108, 1
      %s110 = scalar_select %p107, %s108, %s109
      %p113 = pneg %p107
      %p114 = scmp.eq.s32.totalorder %s22, 1
      %p115 = por %p113, %p114
      %p116 = scmp.ne.s32.totalorder %s108, %s111
      %p117 = scmp.eq.s32.totalorder %s22, 0
      %p118 = por %p116, %p117
      %p119 = scmp.ne.s32.totalorder %s108, %s111
      %p120 = scmp.eq.s32.totalorder %s27, 1
      %p121 = por %p119, %p120
      %p122 = scmp.ne.s32.totalorder %s111, %s112
      %p123 = scmp.eq.s32.totalorder %s27, 0
      %p124 = por %p122, %p123
      %p125 = scmp.ne.s32.totalorder %s111, %s112
      %p126 = scmp.eq.s32.totalorder %s28, 1
      %p127 = por %p125, %p126
      %p129 = scmp.ne.s32.totalorder %s112, %s128
      %p130 = scmp.eq.s32.totalorder %s28, 0
      %p131 = por %p129, %p130
      %s132 = ssub.s32 %s29, %s41
      %p133 = scmp.eq.s32.totalorder %s132, 0
      %s135 = sadd.s32 %s134, 1
      %s136 = scalar_select %p133, %s134, %s135
      %p139 = pneg %p133
      %p140 = scmp.eq.s32.totalorder %s22, 1
      %p141 = por %p139, %p140
      %p142 = scmp.ne.s32.totalorder %s134, %s137
      %p143 = scmp.eq.s32.totalorder %s22, 0
      %p144 = por %p142, %p143
      %p145 = scmp.ne.s32.totalorder %s134, %s137
      %p146 = scmp.eq.s32.totalorder %s27, 1
      %p147 = por %p145, %p146
      %p148 = scmp.ne.s32.totalorder %s137, %s138
      %p149 = scmp.eq.s32.totalorder %s27, 0
      %p150 = por %p148, %p149
      %p151 = scmp.ne.s32.totalorder %s137, %s138
      %p152 = scmp.eq.s32.totalorder %s28, 1
      %p153 = por %p151, %p152
      %p155 = scmp.ne.s32.totalorder %s138, %s154
      %p156 = scmp.eq.s32.totalorder %s28, 0
      %p157 = por %p155, %p156
      %p158 = scmp.le.s32.totalorder 1, %s22
      %p159 = scmp.lt.s32.totalorder %s22, 3
      %p160 = pnand %p158, %p159
      %p161 = pneg %p160
      // Predicated region
      $region9: #{tpu_custom_call.1} parent=5 // pred_check
        _
      $region10: #{tpu_custom_call.1} parent=5 // pred_check_branch
        %163 = sbr.rel (%p160) target = $region12
      $region11: #{tpu_custom_call.1} parent=5 // pred_region
        %s164 = ssub.s32 %s22, 1
      $region12: #{tpu_custom_call.1} parent=5 // pred_fallthru
        _
      %p165 = scmp.lt.s32.totalorder %s22, 2
      // Predicated region
      $region13: #{tpu_custom_call.1} parent=5 // pred_check
        %p166 = pneg %p165
      $region14: #{tpu_custom_call.1} parent=5 // pred_check_branch
        %168 = sbr.rel (%p166) target = $region16
      $region15: #{tpu_custom_call.1} parent=5 // pred_region
        // Predicated region
        $region17: #{tpu_custom_call.1} parent=15 // pred_check
          %p169 = pneg %p60
        $region18: #{tpu_custom_call.1} parent=15 // pred_check_branch
          %171 = sbr.rel (%p169) target = $region20
        $region19: #{tpu_custom_call.1} parent=15 // pred_region
          %s172 = sand.u32 %s50, 1
          %s173 = scalar_lea.sflag [#allocation5], %s172
          %s174 = sand.u32 %s50, 1
          %s175 = smul.addr %s174, 8
          %s176 = scalar_lea.vmem [#allocation4], %s175
          %s177 = sadd.s32 %s29, %s30
          %p178 = scmp.lt.s32.totalorder %s177, 0
          %s179 = scalar_select %p178, %s177, 0
          %s181 = ssub.s32 128, 128
          %182 = vsyncadd %s173, %s181
          %s183 = smul.addr %s179, 128
          %s184 = scalar_lea.hbm %s0, %s183
          %s186 = sshll.u32 %s176, 4
          %s187 = int_to_ptr.vmem [resolvable:$true] %s186
          %189 = dma.hbm_to_vmem [thread:$0]  %s184, 128, %s187, %s173
        $region20: #{tpu_custom_call.1} parent=15 // pred_fallthru
          _
        // Predicated region
        $region21: #{tpu_custom_call.1} parent=15 // pred_check
          %p190 = pneg %p92
        $region22: #{tpu_custom_call.1} parent=15 // pred_check_branch
          %192 = sbr.rel (%p190) target = $region24
        $region23: #{tpu_custom_call.1} parent=15 // pred_region
          %s193 = sand.u32 %s82, 1
          %s194 = scalar_lea.sflag [#allocation8], %s193
          %s195 = sand.u32 %s82, 1
          %s196 = smul.addr %s195, 8
          %s197 = scalar_lea.vmem [#allocation7], %s196
          %s198 = sadd.s32 %s29, %s30
          %p199 = scmp.lt.s32.totalorder %s198, 0
          %s200 = scalar_select %p199, %s198, 0
          %s202 = ssub.s32 128, 128
          %203 = vsyncadd %s194, %s202
          %s204 = smul.addr %s200, 128
          %s205 = scalar_lea.hbm %s1, %s204
          %s207 = sshll.u32 %s197, 4
          %s208 = int_to_ptr.vmem [resolvable:$true] %s207
          %210 = dma.hbm_to_vmem [thread:$0]  %s205, 128, %s208, %s194
        $region24: #{tpu_custom_call.1} parent=15 // pred_fallthru
          _
      $region16: #{tpu_custom_call.1} parent=5 // pred_fallthru
        _
      %p211 = scmp.le.s32.totalorder 1, %s22
      %p212 = scmp.lt.s32.totalorder %s22, 3
      %p213 = pnand %p211, %p212
      %p214 = pneg %p213
      // Predicated region
      $region25: #{tpu_custom_call.1} parent=5 // pred_check
        _
      $region26: #{tpu_custom_call.1} parent=5 // pred_check_branch
        %216 = sbr.rel (%p213) target = $region28
      $region27: #{tpu_custom_call.1} parent=5 // pred_region
        %s217 = ssub.s32 %s22, 1
        %s218 = sand.u32 %s53, 1
        %s219 = scalar_lea.sflag [#allocation5], %s218
        %s220 = sand.u32 %s53, 1
        %s221 = smul.addr %s220, 8
        %s222 = scalar_lea.vmem [#allocation4], %s221
        // Predicated region
        $region29: #{tpu_custom_call.1} parent=27 // pred_check
          %p223 = pneg %p66
        $region30: #{tpu_custom_call.1} parent=27 // pred_check_branch
          %225 = sbr.rel (%p223) target = $region32
        $region31: #{tpu_custom_call.1} parent=27 // pred_region
          %226 = dma.done %s219, 128
        $region32: #{tpu_custom_call.1} parent=27 // pred_fallthru
          _
        %s227 = sand.u32 %s85, 1
        %s228 = scalar_lea.sflag [#allocation8], %s227
        %s229 = sand.u32 %s85, 1
        %s230 = smul.addr %s229, 8
        %s231 = scalar_lea.vmem [#allocation7], %s230
        // Predicated region
        $region33: #{tpu_custom_call.1} parent=27 // pred_check
          %p232 = pneg %p98
        $region34: #{tpu_custom_call.1} parent=27 // pred_check_branch
          %234 = sbr.rel (%p232) target = $region36
        $region35: #{tpu_custom_call.1} parent=27 // pred_region
          %235 = dma.done %s228, 128
        $region36: #{tpu_custom_call.1} parent=27 // pred_fallthru
          _
        %s236 = sand.u32 %s53, 1
        %s237 = scalar_lea.sflag [#allocation5], %s236
        %s238 = sand.u32 %s53, 1
        %s239 = smul.addr %s238, 8
        %s240 = scalar_lea.vmem [#allocation4], %s239
        %p241 = pneg %p66
        %p242 = pneg %p63
        %s243 = sand.u32 %s85, 1
        %s244 = scalar_lea.sflag [#allocation8], %s243
        %s245 = sand.u32 %s85, 1
        %s246 = smul.addr %s245, 8
        %s247 = scalar_lea.vmem [#allocation7], %s246
        %p248 = pneg %p98
        %p249 = pneg %p95
        %p250 = pneg %p124
        %p251 = pneg %p121
        %s252 = sand.u32 %s111, 1
        %s253 = scalar_lea.sflag [#allocation6], %s252
        %s254 = sand.u32 %s111, 1
        %s255 = smul.addr %s254, 8
        %s256 = scalar_lea.vmem [#allocation9], %s255
        %p257 = pneg %p150
        %p258 = pneg %p147
        %s259 = sand.u32 %s137, 1
        %s260 = scalar_lea.sflag [#allocation11], %s259
        %s261 = sand.u32 %s137, 1
        %s262 = smul.addr %s261, 8
        %s263 = scalar_lea.vmem [#allocation10], %s262
        %s264 = sadd.s32 %s31, %s32
        %p265 = scmp.lt.s32.totalorder %s264, 0
        %s266 = scalar_select %p265, %s264, 0
        %s267 = sadd.s32 %s31, %s32
        %p268 = scmp.lt.s32.totalorder %s267, 0
        %s269 = scalar_select %p268, %s267, 0
        %p270 = scmp.eq.s32.totalorder %s32, 0
        // Predicated region
        $region37: #{tpu_custom_call.1} parent=27 // pred_check
          %p271 = pneg %p270
        $region38: #{tpu_custom_call.1} parent=27 // pred_check_branch
          %273 = sbr.rel (%p271) target = $region40
        $region39: #{tpu_custom_call.1} parent=27 // pred_region
          %274 = vst [vmem:[#allocation2] sm:$0xff] 0.0
          %275 = vst [vmem:[#allocation3] sm:$0xff] 0.0
        $region40: #{tpu_custom_call.1} parent=27 // pred_fallthru
          _
        %v276 = vld [vmem:[%s222] sm:$0xff]
        %v277 = vld [vmem:[%s231] sm:$0xff]
        %vm278 = vcmp.gt.f32.partialorder %v276, 0.0
        %s279 = sadd.s32 %s31, %s32
        %v280 = vlaneseq
        %v281 = vshrl.u32 %v280, 7
        %s282 = smul.u32 %s279, 8
        %v283 = vstv %s282
        %v284 = vadd.s32 %v281, %v283
        %v285 = vlaneseq
        %v286 = vand.u32 %v285, 127
        %v287 = vmul.u32 %v284, 128
        %v288 = vadd.s32 %v287, %v286
        %vm289 = vcmp.lt.s32.totalorder %v288, 512
        %vm290 = vmand %vm278, %vm289
        %v291 = vsel %vm290, 1, 0
        %v292 = vcvt.s32.f32 %v291
        %v293 = vsel %vm290, %v277, 0.0
        %v294 = vld [vmem:[#allocation2] sm:$0xff]
        %v295 = vadd.f32 %v293, 0.0
        %v296 = vadd.f32 %v294, %v295
        %297 = vst [vmem:[#allocation2] sm:$0xff] %v296
        %v298 = vld [vmem:[#allocation3] sm:$0xff]
        %v299 = vadd.f32 %v292, 0.0
        %v300 = vadd.f32 %v298, %v299
        %301 = vst [vmem:[#allocation3] sm:$0xff] %v300
        // Predicated region
        $region41: #{tpu_custom_call.1} parent=27 // pred_check
          %p302 = pneg %p270
        $region42: #{tpu_custom_call.1} parent=27 // pred_check_branch
          %304 = sbr.rel (%p302) target = $region44
        $region43: #{tpu_custom_call.1} parent=27 // pred_region
          %v305 = vld [vmem:[#allocation2] sm:$0xff]
          %306 = vst [vmem:[%s256] sm:$0xff] %v305
          %v307 = vld [vmem:[#allocation3] sm:$0xff]
          %308 = vst [vmem:[%s263] sm:$0xff] %v307
        $region44: #{tpu_custom_call.1} parent=27 // pred_fallthru
          _
        %s309 = sand.u32 %s111, 1
        %s310 = scalar_lea.sflag [#allocation6], %s309
        %s311 = sand.u32 %s111, 1
        %s312 = smul.addr %s311, 8
        %s313 = scalar_lea.vmem [#allocation9], %s312
        %s314 = sand.u32 %s137, 1
        %s315 = scalar_lea.sflag [#allocation11], %s314
        %s316 = sand.u32 %s137, 1
        %s317 = smul.addr %s316, 8
        %s318 = scalar_lea.vmem [#allocation10], %s317
        // Predicated region
        $region45: #{tpu_custom_call.1} parent=27 // pred_check
          %p319 = pneg %p121
        $region46: #{tpu_custom_call.1} parent=27 // pred_check_branch
          %321 = sbr.rel (%p319) target = $region48
        $region47: #{tpu_custom_call.1} parent=27 // pred_region
          %s323 = ssub.s32 128, 128
          %324 = vsyncadd %s310, %s323
          %s325 = smul.addr %s31, 128
          %s326 = scalar_lea.hbm %s2, %s325
          %s328 = sshll.u32 %s313, 4
          %s329 = int_to_ptr.vmem [resolvable:$true] %s328
          %331 = dma.vmem_to_hbm [thread:$0]  %s329, 128, %s326, %s310
        $region48: #{tpu_custom_call.1} parent=27 // pred_fallthru
          _
        // Predicated region
        $region49: #{tpu_custom_call.1} parent=27 // pred_check
          %p332 = pneg %p147
        $region50: #{tpu_custom_call.1} parent=27 // pred_check_branch
          %334 = sbr.rel (%p332) target = $region52
        $region51: #{tpu_custom_call.1} parent=27 // pred_region
          %s336 = ssub.s32 128, 128
          %337 = vsyncadd %s315, %s336
          %s338 = smul.addr %s31, 128
          %s339 = scalar_lea.hbm %s3, %s338
          %s341 = sshll.u32 %s318, 4
          %s342 = int_to_ptr.vmem [resolvable:$true] %s341
          %344 = dma.vmem_to_hbm [thread:$0]  %s342, 128, %s339, %s315
        $region52: #{tpu_custom_call.1} parent=27 // pred_fallthru
          _
      $region28: #{tpu_custom_call.1} parent=5 // pred_fallthru
        _
      %p345 = scmp.le.s32.totalorder 2, %s22
      // Predicated region
      $region53: #{tpu_custom_call.1} parent=5 // pred_check
        %p346 = pneg %p345
      $region54: #{tpu_custom_call.1} parent=5 // pred_check_branch
        %348 = sbr.rel (%p346) target = $region56
      $region55: #{tpu_custom_call.1} parent=5 // pred_region
        %s349 = ssub.s32 %s22, 2
        // Predicated region
        $region57: #{tpu_custom_call.1} parent=55 // pred_check
          %p350 = pneg %p127
        $region58: #{tpu_custom_call.1} parent=55 // pred_check_branch
          %352 = sbr.rel (%p350) target = $region60
        $region59: #{tpu_custom_call.1} parent=55 // pred_region
          %s353 = sand.u32 %s112, 1
          %s354 = scalar_lea.sflag [#allocation6], %s353
          %s355 = sand.u32 %s112, 1
          %s356 = smul.addr %s355, 8
          %s357 = scalar_lea.vmem [#allocation9], %s356
          %358 = dma.done %s354, 128
        $region60: #{tpu_custom_call.1} parent=55 // pred_fallthru
          _
        // Predicated region
        $region61: #{tpu_custom_call.1} parent=55 // pred_check
          %p359 = pneg %p153
        $region62: #{tpu_custom_call.1} parent=55 // pred_check_branch
          %361 = sbr.rel (%p359) target = $region64
        $region63: #{tpu_custom_call.1} parent=55 // pred_region
          %s362 = sand.u32 %s138, 1
          %s363 = scalar_lea.sflag [#allocation11], %s362
          %s364 = sand.u32 %s138, 1
          %s365 = smul.addr %s364, 8
          %s366 = scalar_lea.vmem [#allocation10], %s365
          %367 = dma.done %s363, 128
        $region64: #{tpu_custom_call.1} parent=55 // pred_fallthru
          _
      $region56: #{tpu_custom_call.1} parent=5 // pred_fallthru
        _
    $region6: #{tpu_custom_call.1} parent=1 // loop_footer
      %s26 = sadd.s32 1, %s22
    $region7: #{tpu_custom_call.1} parent=1 // loop_footer_branch
      %21 = sbr.rel target = $region3
    $region8: #{tpu_custom_call.1} parent=1 // loop_exit
      _
    %368 = vsyncpa [#allocation5], 1
    %s369 = scalar_lea.sflag [#allocation5], 1
    %370 = vsyncpa %s369, 1
    %371 = vsyncpa [#allocation8], 1
    %s372 = scalar_lea.sflag [#allocation8], 1
    %373 = vsyncpa %s372, 1
    %374 = vsyncpa [#allocation6], 1
    %s375 = scalar_lea.sflag [#allocation6], 1
    %376 = vsyncpa %s375, 1
    %377 = vsyncpa [#allocation11], 1
    %s378 = scalar_lea.sflag [#allocation11], 1
    %379 = vsyncpa %s378, 1

</llo_original>
